<compile_context>
chip_gen: v5e
topology: v5e:2x2
jax: 0.10.0
libtpu: 0.0.40
codegen_flags: <defaults>
</compile_context>

<pallas_src>
import functools

import jax
import jax.numpy as jnp
from jax import lax
from jax.experimental import pallas as pl
from jax.experimental.pallas import tpu as pltpu

DIM = 8                               # args.dim
FIELDS = 3                            # ['Brand_ID', 'Cate1_ID', 'Region_ID']
FEAT_DIM = FIELDS * DIM               # 24
OUT_IN = FIELDS + DIM + FEAT_DIM      # 35 : [fm_first(3) | fm_second(8) | deep(24)]
USER_F = 2 * DIM + 2                  # 18 : [emb_brand(8) | emb_cate(8) | fo_brand | fo_cate]
REGION_ROWS = DIM + FEAT_DIM + 1      # 33 : [emb_region(8) ; r1(24) ; c_region(1)]


def _round_up(x, m):
    return ((x + m - 1) // m) * m


def deepfm_kernel(u_ref, r_ref, w1u_ref, w2_ref, b2_ref, wo_col_ref, wo_row_ref,
                  out_ref, t1_ref, deep_ref, *, act_dtype):
    d = DIM
    tb = u_ref.shape[0]                              # users per grid step (static)
    tr = r_ref.shape[1]                              # regions per grid step (static)

    u = u_ref[...]                                   # (tb, 18) users on sublanes
    rg = r_ref[...]                                  # (33, tr) regions on lanes
    e_r = rg[0:d, :]                                 # (8, tr)
    r1 = rg[d:d + FEAT_DIM, :]                       # (24, tr) = W1[:,16:24] @ e_r + b1
    c_region = rg[d + FEAT_DIM:d + FEAT_DIM + 1, :]  # (1, tr)  = wo[2]*fo_r + bo

    b2 = b2_ref[...]                                 # (24, 1)
    wo_row = wo_row_ref[...]                         # (1, 35)
    wo_h = wo_col_ref[...][FIELDS + d:, :]           # (24, 1) deep part of output layer
    wo_fm = wo_row[:, FIELDS:FIELDS + d]             # (1, 8)

    e_b = u[:, 0:d]                                  # (tb, 8)
    e_c = u[:, d:2 * d]                              # (tb, 8)
    fo_b = u[:, 2 * d:2 * d + 1]                     # (tb, 1)
    fo_c = u[:, 2 * d + 1:2 * d + 2]                 # (tb, 1)

    # --- FM second-order + first-order + bias contributions to the logit ----
    # fm2 = e_b*e_c + (e_b+e_c)*e_r per dim, dotted with wo_fm, split into a
    # (user x region) cross matmul plus per-user / per-region constants.
    cross = jnp.dot((e_b + e_c) * wo_fm, e_r,
                    preferred_element_type=jnp.float32)                        # (tb, tr)
    c_user = (jnp.sum(e_b * e_c * wo_fm, axis=1, keepdims=True)
              + fo_b * wo_row[:, 0:1] + fo_c * wo_row[:, 1:2])                 # (tb, 1)
    base = cross + c_user + c_region                                           # (tb, tr)

    # --- deep path, batched over all tb users of the tile -------------------
    # user-only half of layer 1 for every user of the tile: W1[:, :16] @ U^T
    u1 = lax.dot_general(w1u_ref[...], u[:, :2 * d],
                         (((1,), (1,)), ((), ())),
                         preferred_element_type=jnp.float32)                   # (24, tb)

    # Build T1 = tanh(layer-1 pre-act) as one (24, tb*tr) slab in VMEM scratch:
    # each per-user piece is a dense (24, tr) store at a 128-aligned lane offset.
    for b in range(tb):
        t1_ref[:, b * tr:(b + 1) * tr] = jnp.tanh(
            (r1 + u1[:, b:b + 1]).astype(act_dtype))

    # TODO(synk): nn.Dropout(0.2) omitted (inference semantics -> identity).
    # Single streaming W2 matmul over N = tb*tr, single tanh.
    z2 = jnp.dot(w2_ref[...].astype(act_dtype), t1_ref[...],
                 preferred_element_type=jnp.float32) + b2                      # (24, tb*tr)
    t2 = jnp.tanh(z2.astype(act_dtype))                                        # (24, tb*tr)

    # wo_h reduction per user (sublane reduce over 24) into a (tb, tr) scratch.
    for b in range(tb):
        deep_ref[b:b + 1, :] = jnp.sum(wo_h * t2[:, b * tr:(b + 1) * tr],
                                       axis=0, keepdims=True)

    # One dense (tb, tr) sigmoid + lane/sublane-dense store per grid step.
    out_ref[...] = jax.nn.sigmoid(deep_ref[...] + base)


def deepfm_forward(params, brand_ids, cate_ids, *, num_regions,
                   tile_b=32, tile_r=2048, use_bf16_activations=False):
    """Returns ratings of shape (batch, num_regions), matching the PyTorch module.

    use_bf16_activations: run the deep-path tanh/matmul in bf16 (v6e/v7x EUP
    lever).  Keep False on v5e (no bf16 VPU/EUP path) or when full-f32
    accuracy is required.
    """
    B = int(brand_ids.shape[0])
    R = int(num_regions)
    f32 = jnp.float32
    act_dtype = jnp.bfloat16 if use_bf16_activations else f32
    hi = jax.lax.Precision.HIGHEST

    w1 = params['w1'].astype(f32)
    b1 = params['b1'].astype(f32)
    w2 = params['w2'].astype(f32)
    b2 = params['b2'].astype(f32)
    wo = params['wo'].astype(f32)
    bo = params['bo'].astype(f32)

    # ---- user-only glue: embedding gathers only -> (B, 18) -----------------
    user_feat = jnp.concatenate(
        [jnp.take(params['emb_brand'], brand_ids, axis=0),     # (B, 8)
         jnp.take(params['emb_cate'], cate_ids, axis=0),       # (B, 8)
         jnp.take(params['fo_brand'], brand_ids, axis=0),      # (B, 1)
         jnp.take(params['fo_cate'], cate_ids, axis=0)],       # (B, 1)
        axis=1).astype(f32)

    # ---- region-only glue, hoisted out of the kernel (computed once) -------
    emb_r_t = params['emb_region'].astype(f32).T                              # (8, R)
    r1 = jnp.dot(w1[:, 2 * DIM:], emb_r_t, precision=hi) + b1                 # (24, R)
    c_region = wo[FIELDS - 1, 0] * params['fo_region'].astype(f32).T + bo     # (1, R)
    region_tab = jnp.concatenate([emb_r_t, r1, c_region], axis=0)             # (33, R)

    # ---- tiling: lanes padded to 128 multiples, sublanes to 8 ---------------
    r_pad = _round_up(R, 128)
    if r_pad <= tile_r:
        tile_r = r_pad
    else:
        tile_r = _round_up(tile_r, 128)
        r_pad = _round_up(R, tile_r)
    if B <= tile_b:
        tile_b = _round_up(B, 8)
        b_pad = tile_b
    else:
        tile_b = _round_up(tile_b, 8)
        b_pad = _round_up(B, tile_b)
    # Keep >= 2 grid steps along a "parallel" axis when possible (v7x: 2 TCs).
    if b_pad // tile_b == 1 and r_pad // tile_r == 1 and r_pad >= 256:
        tile_r = _round_up((r_pad + 1) // 2, 128)
        r_pad = _round_up(R, tile_r)

    user_feat = jnp.pad(user_feat, ((0, b_pad - B), (0, 0)))
    region_tab = jnp.pad(region_tab, ((0, 0), (0, r_pad - R)))

    grid = (b_pad // tile_b, r_pad // tile_r)
    full = lambda i, j: (0, 0)

    kernel = functools.partial(deepfm_kernel, act_dtype=act_dtype)

    out = pl.pallas_call(
        kernel,
        out_shape=jax.ShapeDtypeStruct((b_pad, r_pad), f32),
        grid_spec=pltpu.PrefetchScalarGridSpec(
            num_scalar_prefetch=0,
            grid=grid,
            in_specs=[
                pl.BlockSpec((tile_b, USER_F), lambda i, j: (i, 0)),       # user feats
                pl.BlockSpec((REGION_ROWS, tile_r), lambda i, j: (0, j)),  # region table
                pl.BlockSpec((FEAT_DIM, 2 * DIM), full),                   # W1[:, :16]
                pl.BlockSpec((FEAT_DIM, FEAT_DIM), full),                  # W2
                pl.BlockSpec((FEAT_DIM, 1), full),                         # b2
                pl.BlockSpec((OUT_IN, 1), full),                           # wo (column)
                pl.BlockSpec((1, OUT_IN), full),                           # wo (row)
            ],
            out_specs=pl.BlockSpec((tile_b, tile_r), lambda i, j: (i, j)),
            scratch_shapes=[
                pltpu.VMEM((FEAT_DIM, tile_b * tile_r), act_dtype),        # T1 slab
                pltpu.VMEM((tile_b, tile_r), f32),                         # deep logits
            ]),
        compiler_params=pltpu.CompilerParams(
            dimension_semantics=("parallel", "parallel"),
            vmem_limit_bytes=48 * 1024 * 1024),
    )(user_feat, region_tab, w1[:, :2 * DIM], w2, b2, wo, wo.T)

    return out[:B, :R]


def deepfm_reference(params, brand_ids, cate_ids, *, num_regions):
    """Pure-JAX reference with the PyTorch math (expanded (B*R, .) form)."""
    hi = jax.lax.Precision.HIGHEST
    B = brand_ids.shape[0]
    brand_idx = jnp.repeat(brand_ids, num_regions)
    cate_idx = jnp.repeat(cate_ids, num_regions)
    region_idx = jnp.tile(jnp.arange(num_regions, dtype=jnp.int32), B)
    e = [jnp.take(params['emb_brand'], brand_idx, axis=0),
         jnp.take(params['emb_cate'], cate_idx, axis=0),
         jnp.take(params['emb_region'], region_idx, axis=0)]
    ffo = jnp.concatenate(
        [jnp.take(params['fo_brand'], brand_idx, axis=0),
         jnp.take(params['fo_cate'], cate_idx, axis=0),
         jnp.take(params['fo_region'], region_idx, axis=0)], axis=1)
    s = e[0] + e[1] + e[2]
    fm2 = 0.5 * (s * s - (e[0] ** 2 + e[1] ** 2 + e[2] ** 2))
    emb = jnp.concatenate(e, axis=1)
    h = jnp.tanh(jnp.dot(emb, params['w1'].T, precision=hi)
                 + params['b1'].reshape(1, -1))
    h = jnp.tanh(jnp.dot(h, params['w2'].T, precision=hi)
                 + params['b2'].reshape(1, -1))
    cat = jnp.concatenate([ffo, fm2, h], axis=1)
    logit = jnp.dot(cat, params['wo'], precision=hi) + params['bo'][0, 0]
    return jax.nn.sigmoid(logit).reshape(B, num_regions)


def xavier_normal(key, shape):
    fan_out, fan_in = shape[0], shape[1]
    std = (2.0 / (fan_in + fan_out)) ** 0.5
    return std * jax.random.normal(key, shape, dtype=jnp.float32)


def init_params(key, *, user_num, cate_num, item_num):
    keys = jax.random.split(key, 12)
    return {
        # second-order embedding tables (num, dim)
        'emb_brand': xavier_normal(keys[0], (user_num, DIM)),
        'emb_cate': xavier_normal(keys[1], (cate_num, DIM)),
        'emb_region': xavier_normal(keys[2], (item_num, DIM)),
        # first-order embedding tables (num, 1)
        'fo_brand': xavier_normal(keys[3], (user_num, 1)),
        'fo_cate': xavier_normal(keys[4], (cate_num, 1)),
        'fo_region': xavier_normal(keys[5], (item_num, 1)),
        # deep projection layers (PyTorch orientation: [out, in])
        'w1': xavier_normal(keys[6], (FEAT_DIM, FEAT_DIM)),
        'b1': 0.01 * jax.random.normal(keys[7], (FEAT_DIM, 1), dtype=jnp.float32),
        'w2': xavier_normal(keys[8], (FEAT_DIM, FEAT_DIM)),
        'b2': 0.01 * jax.random.normal(keys[9], (FEAT_DIM, 1), dtype=jnp.float32),
        # output layer: Linear(field_dim + dim + feat_dim, 1)
        'wo': xavier_normal(keys[10], (OUT_IN, 1)),
        'bo': 0.01 * jax.random.normal(keys[11], (1, 1), dtype=jnp.float32),
    }


if __name__ == "__main__":
    key = jax.random.PRNGKey(0)

    # --- small config (single grid step, R=32 padded to 128 lanes) -----------
    user_num, cate_num, item_num = 10, 6, 32      # item_num == num_regions
    batch = 4
    pkey, ikey1, ikey2 = jax.random.split(key, 3)
    params = init_params(pkey, user_num=user_num, cate_num=cate_num,
                         item_num=item_num)
    brand_ids = jax.random.randint(ikey1, (batch,), 0, user_num, dtype=jnp.int32)
    cate_ids = jax.random.randint(ikey2, (batch,), 0, cate_num, dtype=jnp.int32)

    ratings = jax.block_until_ready(
        deepfm_forward(params, brand_ids, cate_ids, num_regions=item_num))
    ref = deepfm_reference(params, brand_ids, cate_ids, num_regions=item_num)
    assert ratings.shape == (batch, item_num)
    assert jnp.allclose(ratings, ref, atol=2e-3, rtol=2e-3)

    # --- multi user-tile grid + ragged R (300 -> 384) + row padding ----------
    user_num2, cate_num2, item_num2, batch2 = 50, 7, 300, 40
    p2 = init_params(jax.random.PRNGKey(1), user_num=user_num2,
                     cate_num=cate_num2, item_num=item_num2)
    bids2 = jax.random.randint(jax.random.PRNGKey(2), (batch2,), 0, user_num2,
                               dtype=jnp.int32)
    cids2 = jax.random.randint(jax.random.PRNGKey(3), (batch2,), 0, cate_num2,
                               dtype=jnp.int32)
    r2 = jax.block_until_ready(
        deepfm_forward(p2, bids2, cids2, num_regions=item_num2))
    ref2 = deepfm_reference(p2, bids2, cids2, num_regions=item_num2)
    assert r2.shape == (batch2, item_num2)
    assert jnp.allclose(r2, ref2, atol=2e-3, rtol=2e-3)

    # --- bf16 deep-path activations (v6e/v7x EUP lever) + 2-step region split
    r3 = jax.block_until_ready(
        deepfm_forward(p2, bids2, cids2, num_regions=item_num2,
                       tile_b=64, use_bf16_activations=True))
    assert r3.shape == (batch2, item_num2)
    assert jnp.allclose(r3, ref2, atol=2e-2, rtol=0.0)

    print("KERNEL_OK")
</pallas_src>

<mosaic_0001>
module attributes {stable_mosaic.version = 11 : i64} {
  func.func @deepfm_kernel(%arg0: i32, %arg1: i32, %arg2: memref<8x18xf32, #tpu.memory_space<vmem>>, %arg3: memref<33x128xf32, #tpu.memory_space<vmem>>, %arg4: memref<24x16xf32, #tpu.memory_space<vmem>>, %arg5: memref<24x24xf32, #tpu.memory_space<vmem>>, %arg6: memref<24x1xf32, #tpu.memory_space<vmem>>, %arg7: memref<35x1xf32, #tpu.memory_space<vmem>>, %arg8: memref<1x35xf32, #tpu.memory_space<vmem>>, %arg9: memref<8x128xf32, #tpu.memory_space<vmem>>, %arg10: memref<24x1024xf32, #tpu.memory_space<vmem>>, %arg11: memref<8x128xf32, #tpu.memory_space<vmem>>) attributes {dimension_semantics = [#tpu.dimension_semantics<parallel>, #tpu.dimension_semantics<parallel>], iteration_bounds = array<i64: 1, 1>, scalar_prefetch = 0 : i64, scratch_operands = 2 : i64, tpu.core_type = #tpu.core_type<tc>, window_params = [{transform_indices = @transform_0, window_bounds = array<i64: 8, 18>}, {transform_indices = @transform_1, window_bounds = array<i64: 33, 128>}, {pipeline_mode = #tpu.pipeline_mode<synchronous>, transform_indices = @transform_2, window_bounds = array<i64: 24, 16>}, {pipeline_mode = #tpu.pipeline_mode<synchronous>, transform_indices = @transform_3, window_bounds = array<i64: 24, 24>}, {pipeline_mode = #tpu.pipeline_mode<synchronous>, transform_indices = @transform_4, window_bounds = array<i64: 24, 1>}, {pipeline_mode = #tpu.pipeline_mode<synchronous>, transform_indices = @transform_5, window_bounds = array<i64: 35, 1>}, {pipeline_mode = #tpu.pipeline_mode<synchronous>, transform_indices = @transform_6, window_bounds = array<i64: 1, 35>}, {transform_indices = @transform_7, window_bounds = array<i64: 8, 128>}]} {
    %c0 = arith.constant 0 : index
    %c0_0 = arith.constant 0 : index
    %0 = vector.load %arg2[%c0, %c0_0] : memref<8x18xf32, #tpu.memory_space<vmem>>, vector<8x18xf32>
    %c0_1 = arith.constant 0 : index
    %c0_2 = arith.constant 0 : index
    %1 = vector.load %arg3[%c0_1, %c0_2] : memref<33x128xf32, #tpu.memory_space<vmem>>, vector<33x128xf32>
    %2 = vector.extract_strided_slice %1 {offsets = [0, 0], sizes = [8, 128], strides = [1, 1]} : vector<33x128xf32> to vector<8x128xf32>
    %3 = vector.extract_strided_slice %1 {offsets = [8, 0], sizes = [24, 128], strides = [1, 1]} : vector<33x128xf32> to vector<24x128xf32>
    %4 = vector.extract_strided_slice %1 {offsets = [32, 0], sizes = [1, 128], strides = [1, 1]} : vector<33x128xf32> to vector<1x128xf32>
    %c0_3 = arith.constant 0 : index
    %c0_4 = arith.constant 0 : index
    %5 = vector.load %arg6[%c0_3, %c0_4] : memref<24x1xf32, #tpu.memory_space<vmem>>, vector<24x1xf32>
    %c0_5 = arith.constant 0 : index
    %c0_6 = arith.constant 0 : index
    %6 = vector.load %arg8[%c0_5, %c0_6] : memref<1x35xf32, #tpu.memory_space<vmem>>, vector<1x35xf32>
    %c0_7 = arith.constant 0 : index
    %c0_8 = arith.constant 0 : index
    %7 = vector.load %arg7[%c0_7, %c0_8] : memref<35x1xf32, #tpu.memory_space<vmem>>, vector<35x1xf32>
    %8 = vector.extract_strided_slice %7 {offsets = [11, 0], sizes = [24, 1], strides = [1, 1]} : vector<35x1xf32> to vector<24x1xf32>
    %9 = vector.extract_strided_slice %6 {offsets = [0, 3], sizes = [1, 8], strides = [1, 1]} : vector<1x35xf32> to vector<1x8xf32>
    %10 = vector.extract_strided_slice %0 {offsets = [0, 0], sizes = [8, 8], strides = [1, 1]} : vector<8x18xf32> to vector<8x8xf32>
    %11 = vector.extract_strided_slice %0 {offsets = [0, 8], sizes = [8, 8], strides = [1, 1]} : vector<8x18xf32> to vector<8x8xf32>
    %12 = vector.extract_strided_slice %0 {offsets = [0, 16], sizes = [8, 1], strides = [1, 1]} : vector<8x18xf32> to vector<8x1xf32>
    %13 = vector.extract_strided_slice %0 {offsets = [0, 17], sizes = [8, 1], strides = [1, 1]} : vector<8x18xf32> to vector<8x1xf32>
    %14 = arith.addf %10, %11 : vector<8x8xf32>
    %15 = vector.broadcast %9 : vector<1x8xf32> to vector<8x8xf32>
    %16 = arith.mulf %14, %15 : vector<8x8xf32>
    %cst = arith.constant dense<0.000000e+00> : vector<8x128xf32>
    %17 = tpu.matmul %16, %2, %cst {dimension_numbers = #tpu.dot_dimension_numbers<[1], [0], [0], [1], [0, 0, 1, 1], [], []>} : vector<8x8xf32>, vector<8x128xf32>, vector<8x128xf32> -> vector<8x128xf32>
    %18 = arith.mulf %10, %11 : vector<8x8xf32>
    %19 = vector.broadcast %9 : vector<1x8xf32> to vector<8x8xf32>
    %20 = arith.mulf %18, %19 : vector<8x8xf32>
    %cst_9 = arith.constant dense<0.000000e+00> : vector<8xf32>
    %21 = vector.multi_reduction <add>, %20, %cst_9 [1] : vector<8x8xf32> to vector<8xf32>
    %22 = vector.shape_cast %21 : vector<8xf32> to vector<8x1xf32>
    %23 = vector.extract_strided_slice %6 {offsets = [0, 0], sizes = [1, 1], strides = [1, 1]} : vector<1x35xf32> to vector<1x1xf32>
    %24 = vector.broadcast %23 : vector<1x1xf32> to vector<8x1xf32>
    %25 = arith.mulf %12, %24 : vector<8x1xf32>
    %26 = arith.addf %22, %25 : vector<8x1xf32>
    %27 = vector.extract_strided_slice %6 {offsets = [0, 1], sizes = [1, 1], strides = [1, 1]} : vector<1x35xf32> to vector<1x1xf32>
    %28 = vector.broadcast %27 : vector<1x1xf32> to vector<8x1xf32>
    %29 = arith.mulf %13, %28 : vector<8x1xf32>
    %30 = arith.addf %26, %29 : vector<8x1xf32>
    %31 = vector.broadcast %30 : vector<8x1xf32> to vector<8x128xf32>
    %32 = arith.addf %17, %31 : vector<8x128xf32>
    %33 = vector.broadcast %4 : vector<1x128xf32> to vector<8x128xf32>
    %34 = arith.addf %32, %33 : vector<8x128xf32>
    %c0_10 = arith.constant 0 : index
    %c0_11 = arith.constant 0 : index
    %35 = vector.load %arg4[%c0_10, %c0_11] : memref<24x16xf32, #tpu.memory_space<vmem>>, vector<24x16xf32>
    %36 = vector.extract_strided_slice %0 {offsets = [0, 0], sizes = [8, 16], strides = [1, 1]} : vector<8x18xf32> to vector<8x16xf32>
    %cst_12 = arith.constant dense<0.000000e+00> : vector<24x8xf32>
    %37 = tpu.matmul %35, %36, %cst_12 {dimension_numbers = #tpu.dot_dimension_numbers<[1], [1], [0], [0], [0, 0, 1, 0], [], []>} : vector<24x16xf32>, vector<8x16xf32>, vector<24x8xf32> -> vector<24x8xf32>
    %38 = vector.extract_strided_slice %37 {offsets = [0, 0], sizes = [24, 1], strides = [1, 1]} : vector<24x8xf32> to vector<24x1xf32>
    %39 = vector.broadcast %38 : vector<24x1xf32> to vector<24x128xf32>
    %40 = arith.addf %3, %39 : vector<24x128xf32>
    %41 = math.tanh %40 : vector<24x128xf32>
    %c0_13 = arith.constant 0 : index
    %c0_14 = arith.constant 0 : index
    %42 = vector.load %arg10[%c0_13, %c0_14] : memref<24x1024xf32, #tpu.memory_space<vmem>>, vector<24x128xf32>
    tpu.vector_store %arg10[%c0_13, %c0_14], %41 {strides = array<i32>} : memref<24x1024xf32, #tpu.memory_space<vmem>>, vector<24x128xf32>,
    %43 = vector.extract_strided_slice %37 {offsets = [0, 1], sizes = [24, 1], strides = [1, 1]} : vector<24x8xf32> to vector<24x1xf32>
    %44 = vector.broadcast %43 : vector<24x1xf32> to vector<24x128xf32>
    %45 = arith.addf %3, %44 : vector<24x128xf32>
    %46 = math.tanh %45 : vector<24x128xf32>
    %c0_15 = arith.constant 0 : index
    %c128 = arith.constant 128 : index
    %47 = vector.load %arg10[%c0_15, %c128] : memref<24x1024xf32, #tpu.memory_space<vmem>>, vector<24x128xf32>
    tpu.vector_store %arg10[%c0_15, %c128], %46 {strides = array<i32>} : memref<24x1024xf32, #tpu.memory_space<vmem>>, vector<24x128xf32>,
    %48 = vector.extract_strided_slice %37 {offsets = [0, 2], sizes = [24, 1], strides = [1, 1]} : vector<24x8xf32> to vector<24x1xf32>
    %49 = vector.broadcast %48 : vector<24x1xf32> to vector<24x128xf32>
    %50 = arith.addf %3, %49 : vector<24x128xf32>
    %51 = math.tanh %50 : vector<24x128xf32>
    %c0_16 = arith.constant 0 : index
    %c256 = arith.constant 256 : index
    %52 = vector.load %arg10[%c0_16, %c256] : memref<24x1024xf32, #tpu.memory_space<vmem>>, vector<24x128xf32>
    tpu.vector_store %arg10[%c0_16, %c256], %51 {strides = array<i32>} : memref<24x1024xf32, #tpu.memory_space<vmem>>, vector<24x128xf32>,
    %53 = vector.extract_strided_slice %37 {offsets = [0, 3], sizes = [24, 1], strides = [1, 1]} : vector<24x8xf32> to vector<24x1xf32>
    %54 = vector.broadcast %53 : vector<24x1xf32> to vector<24x128xf32>
    %55 = arith.addf %3, %54 : vector<24x128xf32>
    %56 = math.tanh %55 : vector<24x128xf32>
    %c0_17 = arith.constant 0 : index
    %c384 = arith.constant 384 : index
    %57 = vector.load %arg10[%c0_17, %c384] : memref<24x1024xf32, #tpu.memory_space<vmem>>, vector<24x128xf32>
    tpu.vector_store %arg10[%c0_17, %c384], %56 {strides = array<i32>} : memref<24x1024xf32, #tpu.memory_space<vmem>>, vector<24x128xf32>,
    %58 = vector.extract_strided_slice %37 {offsets = [0, 4], sizes = [24, 1], strides = [1, 1]} : vector<24x8xf32> to vector<24x1xf32>
    %59 = vector.broadcast %58 : vector<24x1xf32> to vector<24x128xf32>
    %60 = arith.addf %3, %59 : vector<24x128xf32>
    %61 = math.tanh %60 : vector<24x128xf32>
    %c0_18 = arith.constant 0 : index
    %c512 = arith.constant 512 : index
    %62 = vector.load %arg10[%c0_18, %c512] : memref<24x1024xf32, #tpu.memory_space<vmem>>, vector<24x128xf32>
    tpu.vector_store %arg10[%c0_18, %c512], %61 {strides = array<i32>} : memref<24x1024xf32, #tpu.memory_space<vmem>>, vector<24x128xf32>,
    %63 = vector.extract_strided_slice %37 {offsets = [0, 5], sizes = [24, 1], strides = [1, 1]} : vector<24x8xf32> to vector<24x1xf32>
    %64 = vector.broadcast %63 : vector<24x1xf32> to vector<24x128xf32>
    %65 = arith.addf %3, %64 : vector<24x128xf32>
    %66 = math.tanh %65 : vector<24x128xf32>
    %c0_19 = arith.constant 0 : index
    %c640 = arith.constant 640 : index
    %67 = vector.load %arg10[%c0_19, %c640] : memref<24x1024xf32, #tpu.memory_space<vmem>>, vector<24x128xf32>
    tpu.vector_store %arg10[%c0_19, %c640], %66 {strides = array<i32>} : memref<24x1024xf32, #tpu.memory_space<vmem>>, vector<24x128xf32>,
    %68 = vector.extract_strided_slice %37 {offsets = [0, 6], sizes = [24, 1], strides = [1, 1]} : vector<24x8xf32> to vector<24x1xf32>
    %69 = vector.broadcast %68 : vector<24x1xf32> to vector<24x128xf32>
    %70 = arith.addf %3, %69 : vector<24x128xf32>
    %71 = math.tanh %70 : vector<24x128xf32>
    %c0_20 = arith.constant 0 : index
    %c768 = arith.constant 768 : index
    %72 = vector.load %arg10[%c0_20, %c768] : memref<24x1024xf32, #tpu.memory_space<vmem>>, vector<24x128xf32>
    tpu.vector_store %arg10[%c0_20, %c768], %71 {strides = array<i32>} : memref<24x1024xf32, #tpu.memory_space<vmem>>, vector<24x128xf32>,
    %73 = vector.extract_strided_slice %37 {offsets = [0, 7], sizes = [24, 1], strides = [1, 1]} : vector<24x8xf32> to vector<24x1xf32>
    %74 = vector.broadcast %73 : vector<24x1xf32> to vector<24x128xf32>
    %75 = arith.addf %3, %74 : vector<24x128xf32>
    %76 = math.tanh %75 : vector<24x128xf32>
    %c0_21 = arith.constant 0 : index
    %c896 = arith.constant 896 : index
    %77 = vector.load %arg10[%c0_21, %c896] : memref<24x1024xf32, #tpu.memory_space<vmem>>, vector<24x128xf32>
    tpu.vector_store %arg10[%c0_21, %c896], %76 {strides = array<i32>} : memref<24x1024xf32, #tpu.memory_space<vmem>>, vector<24x128xf32>,
    %c0_22 = arith.constant 0 : index
    %c0_23 = arith.constant 0 : index
    %78 = vector.load %arg5[%c0_22, %c0_23] : memref<24x24xf32, #tpu.memory_space<vmem>>, vector<24x24xf32>
    %c0_24 = arith.constant 0 : index
    %c0_25 = arith.constant 0 : index
    %79 = vector.load %arg10[%c0_24, %c0_25] : memref<24x1024xf32, #tpu.memory_space<vmem>>, vector<24x1024xf32>
    %cst_26 = arith.constant dense<0.000000e+00> : vector<24x1024xf32>
    %80 = tpu.matmul %78, %79, %cst_26 {dimension_numbers = #tpu.dot_dimension_numbers<[1], [0], [0], [1], [0, 0, 1, 1], [], []>} : vector<24x24xf32>, vector<24x1024xf32>, vector<24x1024xf32> -> vector<24x1024xf32>
    %81 = vector.broadcast %5 : vector<24x1xf32> to vector<24x1024xf32>
    %82 = arith.addf %80, %81 : vector<24x1024xf32>
    %83 = math.tanh %82 : vector<24x1024xf32>
    %84 = vector.extract_strided_slice %83 {offsets = [0, 0], sizes = [24, 128], strides = [1, 1]} : vector<24x1024xf32> to vector<24x128xf32>
    %85 = vector.broadcast %8 : vector<24x1xf32> to vector<24x128xf32>
    %86 = arith.mulf %85, %84 : vector<24x128xf32>
    %cst_27 = arith.constant dense<0.000000e+00> : vector<128xf32>
    %87 = vector.multi_reduction <add>, %86, %cst_27 [0] : vector<24x128xf32> to vector<128xf32>
    %88 = vector.shape_cast %87 : vector<128xf32> to vector<1x128xf32>
    %c0_28 = arith.constant 0 : index
    %c0_29 = arith.constant 0 : index
    %89 = vector.load %arg11[%c0_28, %c0_29] : memref<8x128xf32, #tpu.memory_space<vmem>>, vector<1x128xf32>
    tpu.vector_store %arg11[%c0_28, %c0_29], %88 {strides = array<i32>} : memref<8x128xf32, #tpu.memory_space<vmem>>, vector<1x128xf32>,
    %90 = vector.extract_strided_slice %83 {offsets = [0, 128], sizes = [24, 128], strides = [1, 1]} : vector<24x1024xf32> to vector<24x128xf32>
    %91 = vector.broadcast %8 : vector<24x1xf32> to vector<24x128xf32>
    %92 = arith.mulf %91, %90 : vector<24x128xf32>
    %cst_30 = arith.constant dense<0.000000e+00> : vector<128xf32>
    %93 = vector.multi_reduction <add>, %92, %cst_30 [0] : vector<24x128xf32> to vector<128xf32>
    %94 = vector.shape_cast %93 : vector<128xf32> to vector<1x128xf32>
    %c1 = arith.constant 1 : index
    %c0_31 = arith.constant 0 : index
    %95 = vector.load %arg11[%c1, %c0_31] : memref<8x128xf32, #tpu.memory_space<vmem>>, vector<1x128xf32>
    tpu.vector_store %arg11[%c1, %c0_31], %94 {strides = array<i32>} : memref<8x128xf32, #tpu.memory_space<vmem>>, vector<1x128xf32>,
    %96 = vector.extract_strided_slice %83 {offsets = [0, 256], sizes = [24, 128], strides = [1, 1]} : vector<24x1024xf32> to vector<24x128xf32>
    %97 = vector.broadcast %8 : vector<24x1xf32> to vector<24x128xf32>
    %98 = arith.mulf %97, %96 : vector<24x128xf32>
    %cst_32 = arith.constant dense<0.000000e+00> : vector<128xf32>
    %99 = vector.multi_reduction <add>, %98, %cst_32 [0] : vector<24x128xf32> to vector<128xf32>
    %100 = vector.shape_cast %99 : vector<128xf32> to vector<1x128xf32>
    %c2 = arith.constant 2 : index
    %c0_33 = arith.constant 0 : index
    %101 = vector.load %arg11[%c2, %c0_33] : memref<8x128xf32, #tpu.memory_space<vmem>>, vector<1x128xf32>
    tpu.vector_store %arg11[%c2, %c0_33], %100 {strides = array<i32>} : memref<8x128xf32, #tpu.memory_space<vmem>>, vector<1x128xf32>,
    %102 = vector.extract_strided_slice %83 {offsets = [0, 384], sizes = [24, 128], strides = [1, 1]} : vector<24x1024xf32> to vector<24x128xf32>
    %103 = vector.broadcast %8 : vector<24x1xf32> to vector<24x128xf32>
    %104 = arith.mulf %103, %102 : vector<24x128xf32>
    %cst_34 = arith.constant dense<0.000000e+00> : vector<128xf32>
    %105 = vector.multi_reduction <add>, %104, %cst_34 [0] : vector<24x128xf32> to vector<128xf32>
    %106 = vector.shape_cast %105 : vector<128xf32> to vector<1x128xf32>
    %c3 = arith.constant 3 : index
    %c0_35 = arith.constant 0 : index
    %107 = vector.load %arg11[%c3, %c0_35] : memref<8x128xf32, #tpu.memory_space<vmem>>, vector<1x128xf32>
    tpu.vector_store %arg11[%c3, %c0_35], %106 {strides = array<i32>} : memref<8x128xf32, #tpu.memory_space<vmem>>, vector<1x128xf32>,
    %108 = vector.extract_strided_slice %83 {offsets = [0, 512], sizes = [24, 128], strides = [1, 1]} : vector<24x1024xf32> to vector<24x128xf32>
    %109 = vector.broadcast %8 : vector<24x1xf32> to vector<24x128xf32>
    %110 = arith.mulf %109, %108 : vector<24x128xf32>
    %cst_36 = arith.constant dense<0.000000e+00> : vector<128xf32>
    %111 = vector.multi_reduction <add>, %110, %cst_36 [0] : vector<24x128xf32> to vector<128xf32>
    %112 = vector.shape_cast %111 : vector<128xf32> to vector<1x128xf32>
    %c4 = arith.constant 4 : index
    %c0_37 = arith.constant 0 : index
    %113 = vector.load %arg11[%c4, %c0_37] : memref<8x128xf32, #tpu.memory_space<vmem>>, vector<1x128xf32>
    tpu.vector_store %arg11[%c4, %c0_37], %112 {strides = array<i32>} : memref<8x128xf32, #tpu.memory_space<vmem>>, vector<1x128xf32>,
    %114 = vector.extract_strided_slice %83 {offsets = [0, 640], sizes = [24, 128], strides = [1, 1]} : vector<24x1024xf32> to vector<24x128xf32>
    %115 = vector.broadcast %8 : vector<24x1xf32> to vector<24x128xf32>
    %116 = arith.mulf %115, %114 : vector<24x128xf32>
    %cst_38 = arith.constant dense<0.000000e+00> : vector<128xf32>
    %117 = vector.multi_reduction <add>, %116, %cst_38 [0] : vector<24x128xf32> to vector<128xf32>
    %118 = vector.shape_cast %117 : vector<128xf32> to vector<1x128xf32>
    %c5 = arith.constant 5 : index
    %c0_39 = arith.constant 0 : index
    %119 = vector.load %arg11[%c5, %c0_39] : memref<8x128xf32, #tpu.memory_space<vmem>>, vector<1x128xf32>
    tpu.vector_store %arg11[%c5, %c0_39], %118 {strides = array<i32>} : memref<8x128xf32, #tpu.memory_space<vmem>>, vector<1x128xf32>,
    %120 = vector.extract_strided_slice %83 {offsets = [0, 768], sizes = [24, 128], strides = [1, 1]} : vector<24x1024xf32> to vector<24x128xf32>
    %121 = vector.broadcast %8 : vector<24x1xf32> to vector<24x128xf32>
    %122 = arith.mulf %121, %120 : vector<24x128xf32>
    %cst_40 = arith.constant dense<0.000000e+00> : vector<128xf32>
    %123 = vector.multi_reduction <add>, %122, %cst_40 [0] : vector<24x128xf32> to vector<128xf32>
    %124 = vector.shape_cast %123 : vector<128xf32> to vector<1x128xf32>
    %c6 = arith.constant 6 : index
    %c0_41 = arith.constant 0 : index
    %125 = vector.load %arg11[%c6, %c0_41] : memref<8x128xf32, #tpu.memory_space<vmem>>, vector<1x128xf32>
    tpu.vector_store %arg11[%c6, %c0_41], %124 {strides = array<i32>} : memref<8x128xf32, #tpu.memory_space<vmem>>, vector<1x128xf32>,
    %126 = vector.extract_strided_slice %83 {offsets = [0, 896], sizes = [24, 128], strides = [1, 1]} : vector<24x1024xf32> to vector<24x128xf32>
    %127 = vector.broadcast %8 : vector<24x1xf32> to vector<24x128xf32>
    %128 = arith.mulf %127, %126 : vector<24x128xf32>
    %cst_42 = arith.constant dense<0.000000e+00> : vector<128xf32>
    %129 = vector.multi_reduction <add>, %128, %cst_42 [0] : vector<24x128xf32> to vector<128xf32>
    %130 = vector.shape_cast %129 : vector<128xf32> to vector<1x128xf32>
    %c7 = arith.constant 7 : index
    %c0_43 = arith.constant 0 : index
    %131 = vector.load %arg11[%c7, %c0_43] : memref<8x128xf32, #tpu.memory_space<vmem>>, vector<1x128xf32>
    tpu.vector_store %arg11[%c7, %c0_43], %130 {strides = array<i32>} : memref<8x128xf32, #tpu.memory_space<vmem>>, vector<1x128xf32>,
    %c0_44 = arith.constant 0 : index
    %c0_45 = arith.constant 0 : index
    %132 = vector.load %arg11[%c0_44, %c0_45] : memref<8x128xf32, #tpu.memory_space<vmem>>, vector<8x128xf32>
    %133 = arith.addf %132, %34 : vector<8x128xf32>
    %134 = arith.negf %133 : vector<8x128xf32>
    %135 = math.exp %134 : vector<8x128xf32>
    %cst_46 = arith.constant 1.000000e+00 : f32
    %136 = vector.broadcast %cst_46 : f32 to vector<8x128xf32>
    %137 = arith.addf %136, %135 : vector<8x128xf32>
    %138 = arith.divf %136, %137 : vector<8x128xf32>
    %c0_47 = arith.constant 0 : index
    %c0_48 = arith.constant 0 : index
    %139 = vector.load %arg9[%c0_47, %c0_48] : memref<8x128xf32, #tpu.memory_space<vmem>>, vector<8x128xf32>
    tpu.vector_store %arg9[%c0_47, %c0_48], %138 {strides = array<i32>} : memref<8x128xf32, #tpu.memory_space<vmem>>, vector<8x128xf32>,
    return
  }
  func.func @transform_0(%arg0: i32, %arg1: i32) -> (i32, i32) {
    %c0_i32 = arith.constant 0 : i32
    %c0_i32_0 = arith.constant 0 : i32
    return %arg0, %c0_i32 : i32, i32
  }
  func.func @transform_1(%arg0: i32, %arg1: i32) -> (i32, i32) {
    %c0_i32 = arith.constant 0 : i32
    %c0_i32_0 = arith.constant 0 : i32
    return %c0_i32, %arg1 : i32, i32
  }
  func.func @transform_2(%arg0: i32, %arg1: i32) -> (i32, i32) {
    %c0_i32 = arith.constant 0 : i32
    %c0_i32_0 = arith.constant 0 : i32
    %c0_i32_1 = arith.constant 0 : i32
    return %c0_i32, %c0_i32_0 : i32, i32
  }
  func.func @transform_3(%arg0: i32, %arg1: i32) -> (i32, i32) {
    %c0_i32 = arith.constant 0 : i32
    %c0_i32_0 = arith.constant 0 : i32
    %c0_i32_1 = arith.constant 0 : i32
    return %c0_i32, %c0_i32_0 : i32, i32
  }
  func.func @transform_4(%arg0: i32, %arg1: i32) -> (i32, i32) {
    %c0_i32 = arith.constant 0 : i32
    %c0_i32_0 = arith.constant 0 : i32
    %c0_i32_1 = arith.constant 0 : i32
    return %c0_i32, %c0_i32_0 : i32, i32
  }
  func.func @transform_5(%arg0: i32, %arg1: i32) -> (i32, i32) {
    %c0_i32 = arith.constant 0 : i32
    %c0_i32_0 = arith.constant 0 : i32
    %c0_i32_1 = arith.constant 0 : i32
    return %c0_i32, %c0_i32_0 : i32, i32
  }
  func.func @transform_6(%arg0: i32, %arg1: i32) -> (i32, i32) {
    %c0_i32 = arith.constant 0 : i32
    %c0_i32_0 = arith.constant 0 : i32
    %c0_i32_1 = arith.constant 0 : i32
    return %c0_i32, %c0_i32_0 : i32, i32
  }
  func.func @transform_7(%arg0: i32, %arg1: i32) -> (i32, i32) {
    %c0_i32 = arith.constant 0 : i32
    return %arg0, %arg1 : i32, i32
  }
}

</mosaic_0001>

<llo_original>
// kernel: tpu_custom_call.1
$region0: #{tpu_custom_call.1}
  #allocation0 [shape = 'u32[]', space=smem, size = 0x4, offset = 0x4, fixed_abs, tag = 'smem constant byte address 0x4 - core index']
  #allocation1 [shape = 'u32[72,128]{1,0:T(1,128)}', space=vmem, size = 0x9000, scoped, tag = 'internal scratch']
  #allocation2 [shape = 'f32[24,1024]{1,0:T(8,128)}', space=vmem, size = 0x18000, scoped, tag = 'scratch operand']
  #allocation3 [shape = 'f32[8,128]{1,0:T(8,128)}', space=vmem, size = 0x1000, scoped, tag = 'scratch operand']
  %s0 = inlined_call_operand.vmem [shape: f32[8,18], index: 0, kind: input, shape index: {}]
  %s1 = inlined_call_operand.vmem [shape: f32[33,128], index: 1, kind: input, shape index: {}]
  %s2 = inlined_call_operand.vmem [shape: f32[24,16], index: 2, kind: input, shape index: {}]
  %s3 = inlined_call_operand.vmem [shape: f32[24,24], index: 3, kind: input, shape index: {}]
  %s4 = inlined_call_operand.vmem [shape: f32[24,1], index: 4, kind: input, shape index: {}]
  %s5 = inlined_call_operand.vmem [shape: f32[35,1], index: 5, kind: input, shape index: {}]
  %s6 = inlined_call_operand.vmem [shape: f32[1,35], index: 6, kind: input, shape index: {}]
  %s7 = inlined_call_operand.hbm [shape: f32[8,128], index: 7, kind: output, shape index: {}]
  %s8 = sld [smem:[#allocation0]]
  $region38: #{tpu_custom_call.1} parent=0
    _
  %s10 = ssub.s32 1, %s8
  %s11 = scalar_select 0, %s10, %s8
  $region1: #{tpu_custom_call.1} parent=0
    #allocation4 [shape = 'u8[4096]{0}', space=vmem, size = 0x1000, scoped, tag = 'output window, operand 0, single buffered']
    #allocation5 [shape = 's32[1]{0}', space=sflag, size = 0x4, scoped, tag = 'scoped memory for tpu_custom_call.1']
    %12 = vsyncpa [#allocation5], 0
    // Predicated region
    $region2: #{tpu_custom_call.1} parent=1 // pred_check
      _
    $region3: #{tpu_custom_call.1} parent=1 // pred_check_branch
      %14 = sbr.rel (0) target = $region5
    $region4: #{tpu_custom_call.1} parent=1 // pred_region
      _
    $region5: #{tpu_custom_call.1} parent=1 // pred_fallthru
      _
    // Predicated region
    $region6: #{tpu_custom_call.1} parent=1 // pred_check
      _
    $region7: #{tpu_custom_call.1} parent=1 // pred_check_branch
      %16 = sbr.rel (0) target = $region9
    $region8: #{tpu_custom_call.1} parent=1 // pred_region
      _
    $region9: #{tpu_custom_call.1} parent=1 // pred_fallthru
      _
    // Predicated region
    $region10: #{tpu_custom_call.1} parent=1 // pred_check
      _
    $region11: #{tpu_custom_call.1} parent=1 // pred_check_branch
      %18 = sbr.rel (0) target = $region13
    $region12: #{tpu_custom_call.1} parent=1 // pred_region
      _
    $region13: #{tpu_custom_call.1} parent=1 // pred_fallthru
      _
    // Predicated region
    $region14: #{tpu_custom_call.1} parent=1 // pred_check
      _
    $region15: #{tpu_custom_call.1} parent=1 // pred_check_branch
      %20 = sbr.rel (0) target = $region17
    $region16: #{tpu_custom_call.1} parent=1 // pred_region
      _
    $region17: #{tpu_custom_call.1} parent=1 // pred_fallthru
      _
    // Predicated region
    $region18: #{tpu_custom_call.1} parent=1 // pred_check
      _
    $region19: #{tpu_custom_call.1} parent=1 // pred_check_branch
      %22 = sbr.rel (0) target = $region21
    $region20: #{tpu_custom_call.1} parent=1 // pred_region
      _
    $region21: #{tpu_custom_call.1} parent=1 // pred_fallthru
      _
    // Predicated region
    $region22: #{tpu_custom_call.1} parent=1 // pred_check
      _
    $region23: #{tpu_custom_call.1} parent=1 // pred_check_branch
      %24 = sbr.rel (0) target = $region25
    $region24: #{tpu_custom_call.1} parent=1 // pred_region
      _
    $region25: #{tpu_custom_call.1} parent=1 // pred_fallthru
      _
    // Predicated region
    $region26: #{tpu_custom_call.1} parent=1 // pred_check
      _
    $region27: #{tpu_custom_call.1} parent=1 // pred_check_branch
      %26 = sbr.rel (0) target = $region29
    $region28: #{tpu_custom_call.1} parent=1 // pred_region
      _
    $region29: #{tpu_custom_call.1} parent=1 // pred_fallthru
      _
    %v27 = vld [vmem:[%s0] sm:$0xff]
    %v28 = vld [vmem:[%s1] sm:$0xff]
    %v29 = vld [vmem:[%s1 + $0x8] sm:$0xff]
    %v30 = vld [vmem:[%s1 + $0x10] sm:$0xff]
    %v31 = vld [vmem:[%s1 + $0x18] sm:$0xff]
    %v32 = vld [vmem:[%s1 + $0x20] sm:$0x1]
    %v33 = vld [vmem:[%s4] sm:$0xff]
    %v34 = vld [vmem:[%s4 + $0x8] sm:$0xff]
    %v35 = vld [vmem:[%s4 + $0x10] sm:$0xff]
    %v36 = vld [vmem:[%s6] sm:$0x1]
    %v37 = vld [vmem:[%s5 + $0x8] sm:$0xff]
    %v38 = vld [vmem:[%s5 + $0x10] sm:$0xff]
    %v39 = vld [vmem:[%s5 + $0x18] sm:$0xff]
    %v40 = vld [vmem:[%s5 + $0x20] sm:$0x7]
    %42 = vrot.lane.b32.xlu0 %v27, 120
    %v43 = vpop.permute.xlu0 %42
    %v45 = vadd.f32 %v27, %v43
    %v47 = vperm.slane %v36, 0
    %48 = vrot.lane.b32.xlu0 %v47, 125
    %v49 = vpop.permute.xlu0 %48
    %v51 = vmul.f32 %v45, %v49
    %v52 = vmul.f32 %v27, %v43
    %v53 = vmul.f32 %v52, %v49
    %vm54 = vcmask 64512
    %v55 = vsel %vm54, %v53, 0.0
    %56 = vadd.xlane.f32.xlu0 %v55
    %v57 = vpop.xlane.xlu0 %56
    %58 = vrot.lane.b32.xlu0 %v47, 16
    %v59 = vpop.permute.xlu0 %58
    %v61 = vmul.f32 %v27, %v59
    %v62 = vadd.f32 %v57, %v61
    %64 = vrot.lane.b32.xlu0 %v61, 127
    %v65 = vpop.permute.xlu0 %64
    %v67 = vadd.f32 %v62, %v65
    %69 = vset.pattern.permute.xlu0 16
    %70 = vperm.xlu0 %69, %v67
    %v71 = vpop.permute.xlu0 %70
    %v74 = vsel %vm54, %v51, 0
    %76 = vmatpush.msra.mxu0 0.0
    %77 = vmatpush.msra.mxu0 0.0
    %78 = vmatpush.msra.mxu0 0.0
    %79 = vmatpush.msra.mxu0 0.0
    %80 = vmatpush.msra.mxu0 0.0
    %81 = vmatpush.msra.mxu0 0.0
    %82 = vmatpush.msra.mxu0 0.0
    %83 = vmatpush.msra.mxu0 0.0
    %84 = vmatpush.msra.mxu0 0.0
    %85 = vmatpush.msra.mxu0 0.0
    %86 = vmatpush.msra.mxu0 0.0
    %87 = vmatpush.msra.mxu0 0.0
    %88 = vmatpush.msra.mxu0 0.0
    %89 = vmatpush.msra.mxu0 0.0
    %90 = vmatpush.msra.mxu0 0.0
    %91 = vmatpush.msra.mxu0 %v28
    %92 = vmatmul.f32.gmra.mxu0 %v74
    %v93 = vpop.f32.mrf.mxu0
    %v94 = vadd.f32 %v71, %v93
    %95 = vdwg.mxu0
    %v96 = vperm.slane %v32, 0
    %v97 = vadd.f32 %v94, %v96
    %v98 = vld [vmem:[%s2] sm:$0xff]
    %v99 = vld [vmem:[%s2 + $0x8] sm:$0xff]
    %v100 = vld [vmem:[%s2 + $0x10] sm:$0xff]
    %vm101 = vcmask 130048
    %v103 = vsel %vm101, %v98, 0
    %v106 = vsel %vm101, %v99, 0
    %v109 = vsel %vm101, %v100, 0
    %v111 = vsel %vm101, %v27, 0
    %113 = vmatpush.xpose.msra.mxu0 0.0
    %114 = vmatpush.xpose.msra.mxu0 0.0
    %115 = vmatpush.xpose.msra.mxu0 0.0
    %116 = vmatpush.xpose.msra.mxu0 0.0
    %117 = vmatpush.xpose.msra.mxu0 0.0
    %118 = vmatpush.xpose.msra.mxu0 0.0
    %119 = vmatpush.xpose.msra.mxu0 0.0
    %120 = vmatpush.xpose.msra.mxu0 0.0
    %121 = vmatpush.xpose.msra.mxu0 0.0
    %122 = vmatpush.xpose.msra.mxu0 0.0
    %123 = vmatpush.xpose.msra.mxu0 0.0
    %124 = vmatpush.xpose.msra.mxu0 0.0
    %125 = vmatpush.xpose.msra.mxu0 0.0
    %126 = vmatpush.xpose.msra.mxu0 0.0
    %127 = vmatpush.xpose.msra.mxu0 0.0
    %128 = vmatpush.xpose.msra.mxu0 %v111
    %129 = vmatmul.f32.gmra.mxu0 %v103
    %v130 = vpop.f32.mrf.mxu0
    %v131 = vadd.f32 0.0, %v130
    %132 = vmatmul.f32.gmra.mxu0 %v106
    %v133 = vpop.f32.mrf.mxu0
    %v134 = vadd.f32 0.0, %v133
    %135 = vmatmul.f32.gmra.mxu0 %v109
    %v136 = vpop.f32.mrf.mxu0
    %v137 = vadd.f32 0.0, %v136
    %138 = vdwg.mxu0
    %140 = vset.pattern.permute.xlu0 0
    %141 = vperm.xlu0 %140, %v131
    %v142 = vpop.permute.xlu0 %141
    %145 = vset.pattern.permute.xlu0 0
    %146 = vperm.xlu0 %145, %v134
    %v147 = vpop.permute.xlu0 %146
    %150 = vset.pattern.permute.xlu0 0
    %151 = vperm.xlu0 %150, %v137
    %v152 = vpop.permute.xlu0 %151
    %v154 = vadd.f32 %v29, %v142
    %v155 = vadd.f32 %v30, %v147
    %v156 = vadd.f32 %v31, %v152
    %v157 = vtanh.pop %v154
    %v158 = vtanh.pop %v155
    %v159 = vtanh.pop %v156
    %160 = vst [vmem:[#allocation2] sm:$0xff] %v157
    %161 = vst [vmem:[#allocation2 + $0x40] sm:$0xff] %v158
    %162 = vst [vmem:[#allocation2 + $0x80] sm:$0xff] %v159
    %163 = vset.pattern.permute.xlu0 1
    %164 = vperm.xlu0 %163, %v131
    %v165 = vpop.permute.xlu0 %164
    %167 = vset.pattern.permute.xlu0 1
    %168 = vperm.xlu0 %167, %v134
    %v169 = vpop.permute.xlu0 %168
    %171 = vset.pattern.permute.xlu0 1
    %172 = vperm.xlu0 %171, %v137
    %v173 = vpop.permute.xlu0 %172
    %v175 = vadd.f32 %v29, %v165
    %v176 = vadd.f32 %v30, %v169
    %v177 = vadd.f32 %v31, %v173
    %v178 = vtanh.pop %v175
    %v179 = vtanh.pop %v176
    %v180 = vtanh.pop %v177
    %181 = vst [vmem:[#allocation2 + $0x8] sm:$0xff] %v178
    %182 = vst [vmem:[#allocation2 + $0x48] sm:$0xff] %v179
    %183 = vst [vmem:[#allocation2 + $0x88] sm:$0xff] %v180
    %184 = vset.pattern.permute.xlu0 2
    %185 = vperm.xlu0 %184, %v131
    %v186 = vpop.permute.xlu0 %185
    %188 = vset.pattern.permute.xlu0 2
    %189 = vperm.xlu0 %188, %v134
    %v190 = vpop.permute.xlu0 %189
    %192 = vset.pattern.permute.xlu0 2
    %193 = vperm.xlu0 %192, %v137
    %v194 = vpop.permute.xlu0 %193
    %v196 = vadd.f32 %v29, %v186
    %v197 = vadd.f32 %v30, %v190
    %v198 = vadd.f32 %v31, %v194
    %v199 = vtanh.pop %v196
    %v200 = vtanh.pop %v197
    %v201 = vtanh.pop %v198
    %202 = vst [vmem:[#allocation2 + $0x10] sm:$0xff] %v199
    %203 = vst [vmem:[#allocation2 + $0x50] sm:$0xff] %v200
    %204 = vst [vmem:[#allocation2 + $0x90] sm:$0xff] %v201
    %205 = vset.pattern.permute.xlu0 3
    %206 = vperm.xlu0 %205, %v131
    %v207 = vpop.permute.xlu0 %206
    %209 = vset.pattern.permute.xlu0 3
    %210 = vperm.xlu0 %209, %v134
    %v211 = vpop.permute.xlu0 %210
    %213 = vset.pattern.permute.xlu0 3
    %214 = vperm.xlu0 %213, %v137
    %v215 = vpop.permute.xlu0 %214
    %v217 = vadd.f32 %v29, %v207
    %v218 = vadd.f32 %v30, %v211
    %v219 = vadd.f32 %v31, %v215
    %v220 = vtanh.pop %v217
    %v221 = vtanh.pop %v218
    %v222 = vtanh.pop %v219
    %223 = vst [vmem:[#allocation2 + $0x18] sm:$0xff] %v220
    %224 = vst [vmem:[#allocation2 + $0x58] sm:$0xff] %v221
    %225 = vst [vmem:[#allocation2 + $0x98] sm:$0xff] %v222
    %226 = vset.pattern.permute.xlu0 4
    %227 = vperm.xlu0 %226, %v131
    %v228 = vpop.permute.xlu0 %227
    %230 = vset.pattern.permute.xlu0 4
    %231 = vperm.xlu0 %230, %v134
    %v232 = vpop.permute.xlu0 %231
    %234 = vset.pattern.permute.xlu0 4
    %235 = vperm.xlu0 %234, %v137
    %v236 = vpop.permute.xlu0 %235
    %v238 = vadd.f32 %v29, %v228
    %v239 = vadd.f32 %v30, %v232
    %v240 = vadd.f32 %v31, %v236
    %v241 = vtanh.pop %v238
    %v242 = vtanh.pop %v239
    %v243 = vtanh.pop %v240
    %244 = vst [vmem:[#allocation2 + $0x20] sm:$0xff] %v241
    %245 = vst [vmem:[#allocation2 + $0x60] sm:$0xff] %v242
    %246 = vst [vmem:[#allocation2 + $0xa0] sm:$0xff] %v243
    %247 = vset.pattern.permute.xlu0 5
    %248 = vperm.xlu0 %247, %v131
    %v249 = vpop.permute.xlu0 %248
    %251 = vset.pattern.permute.xlu0 5
    %252 = vperm.xlu0 %251, %v134
    %v253 = vpop.permute.xlu0 %252
    %255 = vset.pattern.permute.xlu0 5
    %256 = vperm.xlu0 %255, %v137
    %v257 = vpop.permute.xlu0 %256
    %v259 = vadd.f32 %v29, %v249
    %v260 = vadd.f32 %v30, %v253
    %v261 = vadd.f32 %v31, %v257
    %v262 = vtanh.pop %v259
    %v263 = vtanh.pop %v260
    %v264 = vtanh.pop %v261
    %265 = vst [vmem:[#allocation2 + $0x28] sm:$0xff] %v262
    %266 = vst [vmem:[#allocation2 + $0x68] sm:$0xff] %v263
    %267 = vst [vmem:[#allocation2 + $0xa8] sm:$0xff] %v264
    %268 = vset.pattern.permute.xlu0 6
    %269 = vperm.xlu0 %268, %v131
    %v270 = vpop.permute.xlu0 %269
    %272 = vset.pattern.permute.xlu0 6
    %273 = vperm.xlu0 %272, %v134
    %v274 = vpop.permute.xlu0 %273
    %276 = vset.pattern.permute.xlu0 6
    %277 = vperm.xlu0 %276, %v137
    %v278 = vpop.permute.xlu0 %277
    %v280 = vadd.f32 %v29, %v270
    %v281 = vadd.f32 %v30, %v274
    %v282 = vadd.f32 %v31, %v278
    %v283 = vtanh.pop %v280
    %v284 = vtanh.pop %v281
    %v285 = vtanh.pop %v282
    %286 = vst [vmem:[#allocation2 + $0x30] sm:$0xff] %v283
    %287 = vst [vmem:[#allocation2 + $0x70] sm:$0xff] %v284
    %288 = vst [vmem:[#allocation2 + $0xb0] sm:$0xff] %v285
    %289 = vset.pattern.permute.xlu0 7
    %290 = vperm.xlu0 %289, %v131
    %v291 = vpop.permute.xlu0 %290
    %293 = vset.pattern.permute.xlu0 7
    %294 = vperm.xlu0 %293, %v134
    %v295 = vpop.permute.xlu0 %294
    %297 = vset.pattern.permute.xlu0 7
    %298 = vperm.xlu0 %297, %v137
    %v299 = vpop.permute.xlu0 %298
    %v301 = vadd.f32 %v29, %v291
    %v302 = vadd.f32 %v30, %v295
    %v303 = vadd.f32 %v31, %v299
    %v304 = vtanh.pop %v301
    %v305 = vtanh.pop %v302
    %v306 = vtanh.pop %v303
    %307 = vst [vmem:[#allocation2 + $0x38] sm:$0xff] %v304
    %308 = vst [vmem:[#allocation2 + $0x78] sm:$0xff] %v305
    %309 = vst [vmem:[#allocation2 + $0xb8] sm:$0xff] %v306
    %v310 = vld [vmem:[%s3] sm:$0xff]
    %v311 = vld [vmem:[%s3 + $0x8] sm:$0xff]
    %v312 = vld [vmem:[%s3 + $0x10] sm:$0xff]
    %v313 = vld [vmem:[#allocation2] sm:$0xff]
    %v314 = vld [vmem:[#allocation2 + $0x8] sm:$0xff]
    %v315 = vld [vmem:[#allocation2 + $0x10] sm:$0xff]
    %v316 = vld [vmem:[#allocation2 + $0x18] sm:$0xff]
    %v317 = vld [vmem:[#allocation2 + $0x20] sm:$0xff]
    %v318 = vld [vmem:[#allocation2 + $0x28] sm:$0xff]
    %v319 = vld [vmem:[#allocation2 + $0x30] sm:$0xff]
    %v320 = vld [vmem:[#allocation2 + $0x38] sm:$0xff]
    %v321 = vld [vmem:[#allocation2 + $0x40] sm:$0xff]
    %v322 = vld [vmem:[#allocation2 + $0x48] sm:$0xff]
    %v323 = vld [vmem:[#allocation2 + $0x50] sm:$0xff]
    %v324 = vld [vmem:[#allocation2 + $0x58] sm:$0xff]
    %v325 = vld [vmem:[#allocation2 + $0x60] sm:$0xff]
    %v326 = vld [vmem:[#allocation2 + $0x68] sm:$0xff]
    %v327 = vld [vmem:[#allocation2 + $0x70] sm:$0xff]
    %v328 = vld [vmem:[#allocation2 + $0x78] sm:$0xff]
    %v329 = vld [vmem:[#allocation2 + $0x80] sm:$0xff]
    %v330 = vld [vmem:[#allocation2 + $0x88] sm:$0xff]
    %v331 = vld [vmem:[#allocation2 + $0x90] sm:$0xff]
    %v332 = vld [vmem:[#allocation2 + $0x98] sm:$0xff]
    %v333 = vld [vmem:[#allocation2 + $0xa0] sm:$0xff]
    %v334 = vld [vmem:[#allocation2 + $0xa8] sm:$0xff]
    %v335 = vld [vmem:[#allocation2 + $0xb0] sm:$0xff]
    %v336 = vld [vmem:[#allocation2 + $0xb8] sm:$0xff]
    %338 = vset.pattern.permute.xlu0 0
    %339 = vperm.xlu0 %338, %v33
    %v340 = vpop.permute.xlu0 %339
    %343 = vset.pattern.permute.xlu0 0
    %344 = vperm.xlu0 %343, %v34
    %v345 = vpop.permute.xlu0 %344
    %348 = vset.pattern.permute.xlu0 0
    %349 = vperm.xlu0 %348, %v35
    %v350 = vpop.permute.xlu0 %349
    %vm352 = vcmask 195584
    %v354 = vsel %vm352, %v310, 0
    %v357 = vsel %vm352, %v311, 0
    %v360 = vsel %vm352, %v312, 0
    %362 = vmatpush.msra.mxu0 0.0
    %363 = vmatpush.msra.mxu0 0.0
    %364 = vmatpush.msra.mxu0 0.0
    %365 = vmatpush.msra.mxu0 0.0
    %366 = vmatpush.msra.mxu0 0.0
    %367 = vmatpush.msra.mxu0 0.0
    %368 = vmatpush.msra.mxu0 0.0
    %369 = vmatpush.msra.mxu0 0.0
    %370 = vmatpush.msra.mxu0 0.0
    %371 = vmatpush.msra.mxu0 0.0
    %372 = vmatpush.msra.mxu0 0.0
    %373 = vmatpush.msra.mxu0 0.0
    %374 = vmatpush.msra.mxu0 0.0
    %375 = vmatpush.msra.mxu0 %v329
    %376 = vmatpush.msra.mxu0 %v321
    %377 = vmatpush.msra.mxu0 %v313
    %378 = vmatmul.f32.gmra.mxu0 %v354
    %v379 = vpop.f32.mrf.mxu0
    %v380 = vadd.f32 %v340, %v379
    %381 = vmatmul.f32.gmra.mxu0 %v357
    %v382 = vpop.f32.mrf.mxu0
    %v383 = vadd.f32 %v345, %v382
    %384 = vmatmul.f32.gmra.mxu0 %v360
    %v385 = vpop.f32.mrf.mxu0
    %v386 = vadd.f32 %v350, %v385
    %387 = vdwg.mxu0
    %388 = vmatpush.msra.mxu0 0.0
    %389 = vmatpush.msra.mxu0 0.0
    %390 = vmatpush.msra.mxu0 0.0
    %391 = vmatpush.msra.mxu0 0.0
    %392 = vmatpush.msra.mxu0 0.0
    %393 = vmatpush.msra.mxu0 0.0
    %394 = vmatpush.msra.mxu0 0.0
    %395 = vmatpush.msra.mxu0 0.0
    %396 = vmatpush.msra.mxu0 0.0
    %397 = vmatpush.msra.mxu0 0.0
    %398 = vmatpush.msra.mxu0 0.0
    %399 = vmatpush.msra.mxu0 0.0
    %400 = vmatpush.msra.mxu0 0.0
    %401 = vmatpush.msra.mxu0 %v330
    %402 = vmatpush.msra.mxu0 %v322
    %403 = vmatpush.msra.mxu0 %v314
    %404 = vmatmul.f32.gmra.mxu0 %v354
    %v405 = vpop.f32.mrf.mxu0
    %v406 = vadd.f32 %v340, %v405
    %407 = vmatmul.f32.gmra.mxu0 %v357
    %v408 = vpop.f32.mrf.mxu0
    %v409 = vadd.f32 %v345, %v408
    %410 = vmatmul.f32.gmra.mxu0 %v360
    %v411 = vpop.f32.mrf.mxu0
    %v412 = vadd.f32 %v350, %v411
    %413 = vdwg.mxu0
    %414 = vmatpush.msra.mxu0 0.0
    %415 = vmatpush.msra.mxu0 0.0
    %416 = vmatpush.msra.mxu0 0.0
    %417 = vmatpush.msra.mxu0 0.0
    %418 = vmatpush.msra.mxu0 0.0
    %419 = vmatpush.msra.mxu0 0.0
    %420 = vmatpush.msra.mxu0 0.0
    %421 = vmatpush.msra.mxu0 0.0
    %422 = vmatpush.msra.mxu0 0.0
    %423 = vmatpush.msra.mxu0 0.0
    %424 = vmatpush.msra.mxu0 0.0
    %425 = vmatpush.msra.mxu0 0.0
    %426 = vmatpush.msra.mxu0 0.0
    %427 = vmatpush.msra.mxu0 %v331
    %428 = vmatpush.msra.mxu0 %v323
    %429 = vmatpush.msra.mxu0 %v315
    %430 = vmatmul.f32.gmra.mxu0 %v354
    %v431 = vpop.f32.mrf.mxu0
    %v432 = vadd.f32 %v340, %v431
    %433 = vmatmul.f32.gmra.mxu0 %v357
    %v434 = vpop.f32.mrf.mxu0
    %v435 = vadd.f32 %v345, %v434
    %436 = vmatmul.f32.gmra.mxu0 %v360
    %v437 = vpop.f32.mrf.mxu0
    %v438 = vadd.f32 %v350, %v437
    %439 = vdwg.mxu0
    %440 = vmatpush.msra.mxu0 0.0
    %441 = vmatpush.msra.mxu0 0.0
    %442 = vmatpush.msra.mxu0 0.0
    %443 = vmatpush.msra.mxu0 0.0
    %444 = vmatpush.msra.mxu0 0.0
    %445 = vmatpush.msra.mxu0 0.0
    %446 = vmatpush.msra.mxu0 0.0
    %447 = vmatpush.msra.mxu0 0.0
    %448 = vmatpush.msra.mxu0 0.0
    %449 = vmatpush.msra.mxu0 0.0
    %450 = vmatpush.msra.mxu0 0.0
    %451 = vmatpush.msra.mxu0 0.0
    %452 = vmatpush.msra.mxu0 0.0
    %453 = vmatpush.msra.mxu0 %v332
    %454 = vmatpush.msra.mxu0 %v324
    %455 = vmatpush.msra.mxu0 %v316
    %456 = vmatmul.f32.gmra.mxu0 %v354
    %v457 = vpop.f32.mrf.mxu0
    %v458 = vadd.f32 %v340, %v457
    %459 = vmatmul.f32.gmra.mxu0 %v357
    %v460 = vpop.f32.mrf.mxu0
    %v461 = vadd.f32 %v345, %v460
    %462 = vmatmul.f32.gmra.mxu0 %v360
    %v463 = vpop.f32.mrf.mxu0
    %v464 = vadd.f32 %v350, %v463
    %465 = vdwg.mxu0
    %466 = vmatpush.msra.mxu0 0.0
    %467 = vmatpush.msra.mxu0 0.0
    %468 = vmatpush.msra.mxu0 0.0
    %469 = vmatpush.msra.mxu0 0.0
    %470 = vmatpush.msra.mxu0 0.0
    %471 = vmatpush.msra.mxu0 0.0
    %472 = vmatpush.msra.mxu0 0.0
    %473 = vmatpush.msra.mxu0 0.0
    %474 = vmatpush.msra.mxu0 0.0
    %475 = vmatpush.msra.mxu0 0.0
    %476 = vmatpush.msra.mxu0 0.0
    %477 = vmatpush.msra.mxu0 0.0
    %478 = vmatpush.msra.mxu0 0.0
    %479 = vmatpush.msra.mxu0 %v333
    %480 = vmatpush.msra.mxu0 %v325
    %481 = vmatpush.msra.mxu0 %v317
    %482 = vmatmul.f32.gmra.mxu0 %v354
    %v483 = vpop.f32.mrf.mxu0
    %v484 = vadd.f32 %v340, %v483
    %485 = vmatmul.f32.gmra.mxu0 %v357
    %v486 = vpop.f32.mrf.mxu0
    %v487 = vadd.f32 %v345, %v486
    %488 = vmatmul.f32.gmra.mxu0 %v360
    %v489 = vpop.f32.mrf.mxu0
    %v490 = vadd.f32 %v350, %v489
    %491 = vdwg.mxu0
    %492 = vmatpush.msra.mxu0 0.0
    %493 = vmatpush.msra.mxu0 0.0
    %494 = vmatpush.msra.mxu0 0.0
    %495 = vmatpush.msra.mxu0 0.0
    %496 = vmatpush.msra.mxu0 0.0
    %497 = vmatpush.msra.mxu0 0.0
    %498 = vmatpush.msra.mxu0 0.0
    %499 = vmatpush.msra.mxu0 0.0
    %500 = vmatpush.msra.mxu0 0.0
    %501 = vmatpush.msra.mxu0 0.0
    %502 = vmatpush.msra.mxu0 0.0
    %503 = vmatpush.msra.mxu0 0.0
    %504 = vmatpush.msra.mxu0 0.0
    %505 = vmatpush.msra.mxu0 %v334
    %506 = vmatpush.msra.mxu0 %v326
    %507 = vmatpush.msra.mxu0 %v318
    %508 = vmatmul.f32.gmra.mxu0 %v354
    %v509 = vpop.f32.mrf.mxu0
    %v510 = vadd.f32 %v340, %v509
    %511 = vmatmul.f32.gmra.mxu0 %v357
    %v512 = vpop.f32.mrf.mxu0
    %v513 = vadd.f32 %v345, %v512
    %514 = vmatmul.f32.gmra.mxu0 %v360
    %v515 = vpop.f32.mrf.mxu0
    %v516 = vadd.f32 %v350, %v515
    %517 = vdwg.mxu0
    %518 = vmatpush.msra.mxu0 0.0
    %519 = vmatpush.msra.mxu0 0.0
    %520 = vmatpush.msra.mxu0 0.0
    %521 = vmatpush.msra.mxu0 0.0
    %522 = vmatpush.msra.mxu0 0.0
    %523 = vmatpush.msra.mxu0 0.0
    %524 = vmatpush.msra.mxu0 0.0
    %525 = vmatpush.msra.mxu0 0.0
    %526 = vmatpush.msra.mxu0 0.0
    %527 = vmatpush.msra.mxu0 0.0
    %528 = vmatpush.msra.mxu0 0.0
    %529 = vmatpush.msra.mxu0 0.0
    %530 = vmatpush.msra.mxu0 0.0
    %531 = vmatpush.msra.mxu0 %v335
    %532 = vmatpush.msra.mxu0 %v327
    %533 = vmatpush.msra.mxu0 %v319
    %534 = vmatmul.f32.gmra.mxu0 %v354
    %v535 = vpop.f32.mrf.mxu0
    %v536 = vadd.f32 %v340, %v535
    %537 = vmatmul.f32.gmra.mxu0 %v357
    %v538 = vpop.f32.mrf.mxu0
    %v539 = vadd.f32 %v345, %v538
    %540 = vmatmul.f32.gmra.mxu0 %v360
    %v541 = vpop.f32.mrf.mxu0
    %v542 = vadd.f32 %v350, %v541
    %543 = vdwg.mxu0
    %544 = vmatpush.msra.mxu0 0.0
    %545 = vmatpush.msra.mxu0 0.0
    %546 = vmatpush.msra.mxu0 0.0
    %547 = vmatpush.msra.mxu0 0.0
    %548 = vmatpush.msra.mxu0 0.0
    %549 = vmatpush.msra.mxu0 0.0
    %550 = vmatpush.msra.mxu0 0.0
    %551 = vmatpush.msra.mxu0 0.0
    %552 = vmatpush.msra.mxu0 0.0
    %553 = vmatpush.msra.mxu0 0.0
    %554 = vmatpush.msra.mxu0 0.0
    %555 = vmatpush.msra.mxu0 0.0
    %556 = vmatpush.msra.mxu0 0.0
    %557 = vmatpush.msra.mxu0 %v336
    %558 = vmatpush.msra.mxu0 %v328
    %559 = vmatpush.msra.mxu0 %v320
    %560 = vmatmul.f32.gmra.mxu0 %v354
    %v561 = vpop.f32.mrf.mxu0
    %v562 = vadd.f32 %v340, %v561
    %563 = vmatmul.f32.gmra.mxu0 %v357
    %v564 = vpop.f32.mrf.mxu0
    %v565 = vadd.f32 %v345, %v564
    %566 = vmatmul.f32.gmra.mxu0 %v360
    %v567 = vpop.f32.mrf.mxu0
    %v568 = vadd.f32 %v350, %v567
    %569 = vdwg.mxu0
    %v570 = vtanh.pop %v380
    %v571 = vtanh.pop %v406
    %v572 = vtanh.pop %v432
    %v573 = vtanh.pop %v458
    %v574 = vtanh.pop %v484
    %v575 = vtanh.pop %v510
    %v576 = vtanh.pop %v536
    %v577 = vtanh.pop %v562
    %v578 = vtanh.pop %v383
    %v579 = vtanh.pop %v409
    %v580 = vtanh.pop %v435
    %v581 = vtanh.pop %v461
    %v582 = vtanh.pop %v487
    %v583 = vtanh.pop %v513
    %v584 = vtanh.pop %v539
    %v585 = vtanh.pop %v565
    %v586 = vtanh.pop %v386
    %v587 = vtanh.pop %v412
    %v588 = vtanh.pop %v438
    %v589 = vtanh.pop %v464
    %v590 = vtanh.pop %v490
    %v591 = vtanh.pop %v516
    %v592 = vtanh.pop %v542
    %v593 = vtanh.pop %v568
    %595 = vset.pattern.permute.xlu0 0
    %596 = vperm.xlu0 %595, %v37
    %v597 = vpop.permute.xlu0 %596
    %600 = vset.pattern.permute.xlu0 0
    %601 = vperm.xlu0 %600, %v38
    %v602 = vpop.permute.xlu0 %601
    %605 = vset.pattern.permute.xlu0 0
    %606 = vperm.xlu0 %605, %v39
    %v607 = vpop.permute.xlu0 %606
    %610 = vset.pattern.permute.xlu0 0
    %611 = vperm.xlu0 %610, %v40
    %v612 = vpop.permute.xlu0 %611
    %vm617 = vcmask 1042432
    %v618 = vrot.slane %v570, 5
    %v619 = vrot.slane %v578, 5
    %v620 = vsel %vm617, %v618, %v619
    %v621 = vrot.slane %v586, 5
    %v622 = vsel %vm617, %v619, %v621
    %v627 = vmul.f32 %v597, %v618
    %v628 = vmul.f32 %v602, %v620
    %v629 = vmul.f32 %v607, %v622
    %v630 = vmul.f32 %v612, %v621
    %vm635 = vcmask 1044480
    %v636 = vrot.slane %v627, 3
    %v637 = vrot.slane %v628, 3
    %v638 = vsel %vm635, %v636, %v637
    %v639 = vrot.slane %v629, 3
    %v640 = vsel %vm635, %v637, %v639
    %v641 = vrot.slane %v630, 3
    %v642 = vsel %vm635, %v639, %v641
    %v646 = vadd.f32 %v638, %v640
    %v647 = vadd.f32 %v646, %v642
    %v648 = vrot.slane %v647, 4
    %v649 = vadd.f32 %v647, %v648
    %v650 = vrot.slane %v649, 2
    %v651 = vadd.f32 %v649, %v650
    %v652 = vrot.slane %v651, 1
    %v653 = vadd.f32 %v651, %v652
    %654 = vst [vmem:[#allocation3] sm:$0x1] %v653
    %v658 = vrot.slane %v571, 5
    %v659 = vrot.slane %v579, 5
    %v660 = vsel %vm617, %v658, %v659
    %v661 = vrot.slane %v587, 5
    %v662 = vsel %vm617, %v659, %v661
    %v667 = vmul.f32 %v597, %v658
    %v668 = vmul.f32 %v602, %v660
    %v669 = vmul.f32 %v607, %v662
    %v670 = vmul.f32 %v612, %v661
    %v675 = vrot.slane %v667, 3
    %v676 = vrot.slane %v668, 3
    %v677 = vsel %vm635, %v675, %v676
    %v678 = vrot.slane %v669, 3
    %v679 = vsel %vm635, %v676, %v678
    %v680 = vrot.slane %v670, 3
    %v681 = vsel %vm635, %v678, %v680
    %v685 = vadd.f32 %v677, %v679
    %v686 = vadd.f32 %v685, %v681
    %v687 = vrot.slane %v686, 4
    %v688 = vadd.f32 %v686, %v687
    %v689 = vrot.slane %v688, 2
    %v690 = vadd.f32 %v688, %v689
    %v691 = vrot.slane %v690, 1
    %v692 = vadd.f32 %v690, %v691
    %693 = vst [vmem:[#allocation3 + $0x1] sm:$0x1] %v692
    %v697 = vrot.slane %v572, 5
    %v698 = vrot.slane %v580, 5
    %v699 = vsel %vm617, %v697, %v698
    %v700 = vrot.slane %v588, 5
    %v701 = vsel %vm617, %v698, %v700
    %v706 = vmul.f32 %v597, %v697
    %v707 = vmul.f32 %v602, %v699
    %v708 = vmul.f32 %v607, %v701
    %v709 = vmul.f32 %v612, %v700
    %v714 = vrot.slane %v706, 3
    %v715 = vrot.slane %v707, 3
    %v716 = vsel %vm635, %v714, %v715
    %v717 = vrot.slane %v708, 3
    %v718 = vsel %vm635, %v715, %v717
    %v719 = vrot.slane %v709, 3
    %v720 = vsel %vm635, %v717, %v719
    %v724 = vadd.f32 %v716, %v718
    %v725 = vadd.f32 %v724, %v720
    %v726 = vrot.slane %v725, 4
    %v727 = vadd.f32 %v725, %v726
    %v728 = vrot.slane %v727, 2
    %v729 = vadd.f32 %v727, %v728
    %v730 = vrot.slane %v729, 1
    %v731 = vadd.f32 %v729, %v730
    %732 = vst [vmem:[#allocation3 + $0x2] sm:$0x1] %v731
    %v736 = vrot.slane %v573, 5
    %v737 = vrot.slane %v581, 5
    %v738 = vsel %vm617, %v736, %v737
    %v739 = vrot.slane %v589, 5
    %v740 = vsel %vm617, %v737, %v739
    %v745 = vmul.f32 %v597, %v736
    %v746 = vmul.f32 %v602, %v738
    %v747 = vmul.f32 %v607, %v740
    %v748 = vmul.f32 %v612, %v739
    %v753 = vrot.slane %v745, 3
    %v754 = vrot.slane %v746, 3
    %v755 = vsel %vm635, %v753, %v754
    %v756 = vrot.slane %v747, 3
    %v757 = vsel %vm635, %v754, %v756
    %v758 = vrot.slane %v748, 3
    %v759 = vsel %vm635, %v756, %v758
    %v763 = vadd.f32 %v755, %v757
    %v764 = vadd.f32 %v763, %v759
    %v765 = vrot.slane %v764, 4
    %v766 = vadd.f32 %v764, %v765
    %v767 = vrot.slane %v766, 2
    %v768 = vadd.f32 %v766, %v767
    %v769 = vrot.slane %v768, 1
    %v770 = vadd.f32 %v768, %v769
    %771 = vst [vmem:[#allocation3 + $0x3] sm:$0x1] %v770
    %v775 = vrot.slane %v574, 5
    %v776 = vrot.slane %v582, 5
    %v777 = vsel %vm617, %v775, %v776
    %v778 = vrot.slane %v590, 5
    %v779 = vsel %vm617, %v776, %v778
    %v784 = vmul.f32 %v597, %v775
    %v785 = vmul.f32 %v602, %v777
    %v786 = vmul.f32 %v607, %v779
    %v787 = vmul.f32 %v612, %v778
    %v792 = vrot.slane %v784, 3
    %v793 = vrot.slane %v785, 3
    %v794 = vsel %vm635, %v792, %v793
    %v795 = vrot.slane %v786, 3
    %v796 = vsel %vm635, %v793, %v795
    %v797 = vrot.slane %v787, 3
    %v798 = vsel %vm635, %v795, %v797
    %v802 = vadd.f32 %v794, %v796
    %v803 = vadd.f32 %v802, %v798
    %v804 = vrot.slane %v803, 4
    %v805 = vadd.f32 %v803, %v804
    %v806 = vrot.slane %v805, 2
    %v807 = vadd.f32 %v805, %v806
    %v808 = vrot.slane %v807, 1
    %v809 = vadd.f32 %v807, %v808
    %810 = vst [vmem:[#allocation3 + $0x4] sm:$0x1] %v809
    %v814 = vrot.slane %v575, 5
    %v815 = vrot.slane %v583, 5
    %v816 = vsel %vm617, %v814, %v815
    %v817 = vrot.slane %v591, 5
    %v818 = vsel %vm617, %v815, %v817
    %v823 = vmul.f32 %v597, %v814
    %v824 = vmul.f32 %v602, %v816
    %v825 = vmul.f32 %v607, %v818
    %v826 = vmul.f32 %v612, %v817
    %v831 = vrot.slane %v823, 3
    %v832 = vrot.slane %v824, 3
    %v833 = vsel %vm635, %v831, %v832
    %v834 = vrot.slane %v825, 3
    %v835 = vsel %vm635, %v832, %v834
    %v836 = vrot.slane %v826, 3
    %v837 = vsel %vm635, %v834, %v836
    %v841 = vadd.f32 %v833, %v835
    %v842 = vadd.f32 %v841, %v837
    %v843 = vrot.slane %v842, 4
    %v844 = vadd.f32 %v842, %v843
    %v845 = vrot.slane %v844, 2
    %v846 = vadd.f32 %v844, %v845
    %v847 = vrot.slane %v846, 1
    %v848 = vadd.f32 %v846, %v847
    %849 = vst [vmem:[#allocation3 + $0x5] sm:$0x1] %v848
    %v853 = vrot.slane %v576, 5
    %v854 = vrot.slane %v584, 5
    %v855 = vsel %vm617, %v853, %v854
    %v856 = vrot.slane %v592, 5
    %v857 = vsel %vm617, %v854, %v856
    %v862 = vmul.f32 %v597, %v853
    %v863 = vmul.f32 %v602, %v855
    %v864 = vmul.f32 %v607, %v857
    %v865 = vmul.f32 %v612, %v856
    %v870 = vrot.slane %v862, 3
    %v871 = vrot.slane %v863, 3
    %v872 = vsel %vm635, %v870, %v871
    %v873 = vrot.slane %v864, 3
    %v874 = vsel %vm635, %v871, %v873
    %v875 = vrot.slane %v865, 3
    %v876 = vsel %vm635, %v873, %v875
    %v880 = vadd.f32 %v872, %v874
    %v881 = vadd.f32 %v880, %v876
    %v882 = vrot.slane %v881, 4
    %v883 = vadd.f32 %v881, %v882
    %v884 = vrot.slane %v883, 2
    %v885 = vadd.f32 %v883, %v884
    %v886 = vrot.slane %v885, 1
    %v887 = vadd.f32 %v885, %v886
    %888 = vst [vmem:[#allocation3 + $0x6] sm:$0x1] %v887
    %v892 = vrot.slane %v577, 5
    %v893 = vrot.slane %v585, 5
    %v894 = vsel %vm617, %v892, %v893
    %v895 = vrot.slane %v593, 5
    %v896 = vsel %vm617, %v893, %v895
    %v901 = vmul.f32 %v597, %v892
    %v902 = vmul.f32 %v602, %v894
    %v903 = vmul.f32 %v607, %v896
    %v904 = vmul.f32 %v612, %v895
    %v909 = vrot.slane %v901, 3
    %v910 = vrot.slane %v902, 3
    %v911 = vsel %vm635, %v909, %v910
    %v912 = vrot.slane %v903, 3
    %v913 = vsel %vm635, %v910, %v912
    %v914 = vrot.slane %v904, 3
    %v915 = vsel %vm635, %v912, %v914
    %v919 = vadd.f32 %v911, %v913
    %v920 = vadd.f32 %v919, %v915
    %v921 = vrot.slane %v920, 4
    %v922 = vadd.f32 %v920, %v921
    %v923 = vrot.slane %v922, 2
    %v924 = vadd.f32 %v922, %v923
    %v925 = vrot.slane %v924, 1
    %v926 = vadd.f32 %v924, %v925
    %927 = vst [vmem:[#allocation3 + $0x7] sm:$0x1] %v926
    %v928 = vld [vmem:[#allocation3] sm:$0xff]
    %v929 = vadd.f32 %v928, %v97
    %v930 = vxor.u32 %v929, 2147483648
    %v931 = vmul.f32 %v930, 1.442695
    %v932 = vpow.pop %v931
    %v933 = vadd.f32 %v932, 1.0
    %v934 = vrcp.pop %v933
    %v935 = vmul.f32 %v933, %v934
    %v936 = vsub.f32 1.0, %v935
    %v937 = vmul.f32 %v934, %v936
    %v938 = vadd.f32 %v934, %v937
    %vm939 = vweird.f32 %v933
    %vm940 = vweird.f32 %v934
    %vm941 = vmor %vm939, %vm940
    %v942 = vsel %vm941, %v934, %v938
    %v943 = vand.u32 2147483647, %v933
    %vm944 = vcmp.eq.f32.partialorder %v943, 8.507059e+37
    %v945 = vand.u32 %v933, 2147483648
    %v946 = vor.u32 1.1754944e-38, %v945
    %v947 = vsel %vm944, %v946, %v942
    %v948 = vmul.f32 1.0, %v947
    %949 = vst [vmem:[#allocation4] sm:$0xff] %v948
    // Predicated region
    $region30: #{tpu_custom_call.1} parent=1 // pred_check
      _
    $region31: #{tpu_custom_call.1} parent=1 // pred_check_branch
      %951 = sbr.rel (0) target = $region33
    $region32: #{tpu_custom_call.1} parent=1 // pred_region
      %953 = vsyncadd [#allocation5], 0
      %s955 = sshll.u32 [#allocation4], 4
      %s956 = int_to_ptr.vmem [resolvable:$true] %s955
      %s957 = sshll.u32 %s7, 4
      %s958 = int_to_ptr.hbm [resolvable:$true] %s957
      %960 = dma.vmem_to_hbm [thread:$0]  %s956, 128, %s958, [#allocation5]
    $region33: #{tpu_custom_call.1} parent=1 // pred_fallthru
      _
    // Predicated region
    $region34: #{tpu_custom_call.1} parent=1 // pred_check
      _
    $region35: #{tpu_custom_call.1} parent=1 // pred_check_branch
      %962 = sbr.rel (0) target = $region37
    $region36: #{tpu_custom_call.1} parent=1 // pred_region
      %964 = dma.done [#allocation5], 128
    $region37: #{tpu_custom_call.1} parent=1 // pred_fallthru
      _
    %965 = vsyncpa [#allocation5], 1

</llo_original>
